<compile_context>
chip_gen: v5e
topology: v5e:2x2
jax: 0.10.0
libtpu: 0.0.40
codegen_flags: <defaults>
</compile_context>

<pallas_src>
import functools

import jax
import jax.numpy as jnp
from jax import lax
from jax.experimental import pallas as pl
from jax.experimental.pallas import tpu as pltpu


# TODO(synk): `eps` is an undefined global in the PyTorch source; the standard
# SCE reference implementation clamps the softmax at 1e-7, which is used here.
EPS = 1e-7
LABEL_CLAMP_MIN = 1e-4
NEG_LOG_LABEL_CLAMP = 9.210340371976184  # -log(1e-4), folded at trace time.


def sce_loss_kernel(pred_ref, labels_ref, partial_ref, *,
                    n_rows, num_classes, a, b, tile_n):
    i = pl.program_id(0)

    x = pred_ref[...].astype(jnp.float32)              # [C, TN] classes on sublanes
    labels = labels_ref[...]                            # [1, TN] int32

    # Numerically stable log-softmax over the class (sublane) axis.
    m = jnp.max(x, axis=0, keepdims=True)               # [1, TN]  (XLU reduce)
    z = x - m
    exp_z = jnp.exp(z)                                   # the ONLY full-tile EUP pass
    sum_exp = jnp.sum(exp_z, axis=0, keepdims=True)      # [1, TN]
    log_sum = jnp.log(sum_exp)                           # per-column only

    # One-hot of labels via a sublane iota (no gather needed).
    class_ids = lax.broadcasted_iota(jnp.int32, (num_classes, tile_n), 0)
    onehot = (class_ids == labels).astype(jnp.float32)   # [C, TN]

    # ce_i = -log_softmax(x)[label_i] = log_sum - z[label_i]
    # TODO(synk): like nn.CrossEntropyLoss this assumes in-range labels;
    # out-of-range labels are undefined behavior (no runtime check).
    z_label = jnp.sum(onehot * z, axis=0, keepdims=True)
    ce = log_sum - z_label                               # [1, TN]

    # Clamped softmax, reusing exp_z (no second exp); reciprocal is per-column.
    p_c = jnp.maximum(exp_z * (1.0 / sum_exp), EPS)       # [C, TN]
    sum_pc = jnp.sum(p_c, axis=0, keepdims=True)
    p_label = jnp.sum(onehot * p_c, axis=0, keepdims=True)
    # rce_i = -sum_j clamp(p_j) * log(clamp(onehot_j, 1e-4, 1))
    #       = -log(1e-4) * (sum_j clamp(p_j) - clamp(p_label))   (closed form)
    rce = NEG_LOG_LABEL_CLAMP * (sum_pc - p_label)        # [1, TN]

    # Mask padded columns of the ragged last tile with a SELECT so NaN/Inf in
    # the padded garbage cannot leak (NaN * 0 would still be NaN).
    col_ids = i * tile_n + lax.broadcasted_iota(jnp.int32, (1, tile_n), 1)
    per_col = jnp.where(col_ids < n_rows, a * ce + b * rce, 0.0)

    # Lane-dense (8, 128) partial-sum slab -> unmasked store; wrapper reads [:,0,0].
    partial_ref[...] = jnp.full((1, 8, 128), jnp.sum(per_col), dtype=jnp.float32)


def _round_up(x, m):
    return ((x + m - 1) // m) * m


def sce_loss(pred, labels, *, num_classes, a=1.0, b=1.0, tile_n=8192):
    """loss = a * CrossEntropy(pred, labels) + b * mean(RCE)."""
    n, c = pred.shape
    assert c == num_classes

    # Transposed layout: classes on sublanes (full dim), samples on lanes.
    # Keep pred's native dtype (e.g. bf16) -- the kernel casts to f32 itself.
    pred_t = pred.T                                       # [C, N]
    labels_2d = labels.reshape(1, n).astype(jnp.int32)    # [1, N] lane-dense

    # Lane tile: multiple of 128, large enough to amortize per-step overhead,
    # but capped so grid >= 2 when possible (v7x megacore sharding).
    tile_n = max(128, min(int(tile_n), _round_up(n, 128)))
    tile_n = _round_up(tile_n, 128)
    if n > 128:
        tile_n = min(tile_n, max(128, _round_up(pl.cdiv(n, 2), 128)))
    grid = pl.cdiv(n, tile_n)

    kernel = functools.partial(
        sce_loss_kernel, n_rows=n, num_classes=c,
        a=float(a), b=float(b), tile_n=tile_n)

    partial = pl.pallas_call(
        kernel,
        out_shape=jax.ShapeDtypeStruct((grid, 8, 128), jnp.float32),
        grid_spec=pltpu.PrefetchScalarGridSpec(
            num_scalar_prefetch=0,
            grid=(grid,),
            in_specs=[
                pl.BlockSpec((c, tile_n), lambda i: (0, i)),
                pl.BlockSpec((1, tile_n), lambda i: (0, i)),
            ],
            out_specs=pl.BlockSpec((1, 8, 128), lambda i: (i, 0, 0)),
        ),
        compiler_params=pltpu.CompilerParams(
            # Each grid step owns a distinct output block -> the sample axis is
            # embarrassingly parallel (v7x shards it across its 2 TensorCores);
            # harmless on v5e/v6e.
            dimension_semantics=("parallel",),
            vmem_limit_bytes=32 * 1024 * 1024,
        ),
    )(pred_t, labels_2d)

    return jnp.sum(partial[:, 0, 0]) / jnp.float32(n)


def sce_loss_ref(pred, labels, *, num_classes, a=1.0, b=1.0):
    """Pure-JAX reference mirroring the PyTorch SCELoss.forward."""
    pred = pred.astype(jnp.float32)
    log_p = jax.nn.log_softmax(pred, axis=1)
    ce = -jnp.take_along_axis(log_p, labels[:, None], axis=1)[:, 0]
    p = jnp.clip(jax.nn.softmax(pred, axis=1), EPS, 1.0)
    onehot = jax.nn.one_hot(labels, num_classes, dtype=jnp.float32)
    rce = -jnp.sum(p * jnp.log(jnp.clip(onehot, LABEL_CLAMP_MIN, 1.0)), axis=1)
    return a * jnp.mean(ce) + b * jnp.mean(rce)


if __name__ == "__main__":
    num_classes = 10          # SCELoss default
    a, b = 1.0, 1.0           # SCELoss defaults
    n = 250                   # deliberately NOT a multiple of the lane tile

    key = jax.random.PRNGKey(0)
    k_pred, k_lab = jax.random.split(key)
    pred = jax.random.normal(k_pred, (n, num_classes), jnp.float32) * 2.0
    labels = jax.random.randint(k_lab, (n,), 0, num_classes, dtype=jnp.int32)

    loss = sce_loss(pred, labels, num_classes=num_classes, a=a, b=b)
    jax.block_until_ready(loss)

    loss_ref = sce_loss_ref(pred, labels, num_classes=num_classes, a=a, b=b)
    assert jnp.allclose(loss, loss_ref, rtol=1e-4, atol=1e-5), (loss, loss_ref)

    print("KERNEL_OK")
</pallas_src>

<mosaic_0001>
module attributes {stable_mosaic.version = 11 : i64} {
  func.func @sce_loss_kernel(%arg0: i32, %arg1: memref<10x128xf32, #tpu.memory_space<vmem>>, %arg2: memref<1x128xi32, #tpu.memory_space<vmem>>, %arg3: memref<1x8x128xf32, #tpu.memory_space<vmem>>) attributes {dimension_semantics = [#tpu.dimension_semantics<parallel>], iteration_bounds = array<i64: 2>, scalar_prefetch = 0 : i64, scratch_operands = 0 : i64, tpu.core_type = #tpu.core_type<tc>, window_params = [{transform_indices = @transform_0, window_bounds = array<i64: 10, 128>}, {transform_indices = @transform_1, window_bounds = array<i64: 1, 128>}, {transform_indices = @transform_2, window_bounds = array<i64: 1, 8, 128>}]} {
    %c0 = arith.constant 0 : index
    %c0_0 = arith.constant 0 : index
    %0 = vector.load %arg1[%c0, %c0_0] : memref<10x128xf32, #tpu.memory_space<vmem>>, vector<10x128xf32>
    %c0_1 = arith.constant 0 : index
    %c0_2 = arith.constant 0 : index
    %1 = vector.load %arg2[%c0_1, %c0_2] : memref<1x128xi32, #tpu.memory_space<vmem>>, vector<1x128xi32>
    %cst = arith.constant dense<0xFF800000> : vector<128xf32>
    %2 = vector.multi_reduction <maximumf>, %0, %cst [0] : vector<10x128xf32> to vector<128xf32>
    %3 = vector.shape_cast %2 : vector<128xf32> to vector<1x128xf32>
    %4 = vector.broadcast %3 : vector<1x128xf32> to vector<10x128xf32>
    %5 = arith.subf %0, %4 : vector<10x128xf32>
    %6 = math.exp %5 : vector<10x128xf32>
    %cst_3 = arith.constant dense<0.000000e+00> : vector<128xf32>
    %7 = vector.multi_reduction <add>, %6, %cst_3 [0] : vector<10x128xf32> to vector<128xf32>
    %8 = vector.shape_cast %7 : vector<128xf32> to vector<1x128xf32>
    %9 = math.log %8 : vector<1x128xf32>
    %10 = tpu.iota {dimensions = array<i32: 0>} : vector<10x128xi32>
    %11 = vector.broadcast %1 : vector<1x128xi32> to vector<10x128xi32>
    %12 = arith.cmpi eq, %10, %11 : vector<10x128xi32>
    %13 = arith.extui %12 : vector<10x128xi1> to vector<10x128xi32>
    %14 = arith.sitofp %13 : vector<10x128xi32> to vector<10x128xf32>
    %15 = arith.mulf %14, %5 : vector<10x128xf32>
    %cst_4 = arith.constant dense<0.000000e+00> : vector<128xf32>
    %16 = vector.multi_reduction <add>, %15, %cst_4 [0] : vector<10x128xf32> to vector<128xf32>
    %17 = vector.shape_cast %16 : vector<128xf32> to vector<1x128xf32>
    %18 = arith.subf %9, %17 : vector<1x128xf32>
    %cst_5 = arith.constant 1.000000e+00 : f32
    %19 = vector.broadcast %cst_5 : f32 to vector<1x128xf32>
    %20 = arith.divf %19, %8 : vector<1x128xf32>
    %21 = vector.broadcast %20 : vector<1x128xf32> to vector<10x128xf32>
    %22 = arith.mulf %6, %21 : vector<10x128xf32>
    %cst_6 = arith.constant 1.000000e-07 : f32
    %23 = vector.broadcast %cst_6 : f32 to vector<10x128xf32>
    %24 = arith.maximumf %22, %23 : vector<10x128xf32>
    %cst_7 = arith.constant dense<0.000000e+00> : vector<128xf32>
    %25 = vector.multi_reduction <add>, %24, %cst_7 [0] : vector<10x128xf32> to vector<128xf32>
    %26 = vector.shape_cast %25 : vector<128xf32> to vector<1x128xf32>
    %27 = arith.mulf %14, %24 : vector<10x128xf32>
    %cst_8 = arith.constant dense<0.000000e+00> : vector<128xf32>
    %28 = vector.multi_reduction <add>, %27, %cst_8 [0] : vector<10x128xf32> to vector<128xf32>
    %29 = vector.shape_cast %28 : vector<128xf32> to vector<1x128xf32>
    %30 = arith.subf %26, %29 : vector<1x128xf32>
    %cst_9 = arith.constant 9.21034049 : f32
    %31 = vector.broadcast %cst_9 : f32 to vector<1x128xf32>
    %32 = arith.mulf %31, %30 : vector<1x128xf32>
    %c128_i32 = arith.constant 128 : i32
    %33 = arith.muli %arg0, %c128_i32 : i32
    %34 = tpu.iota {dimensions = array<i32: 1>} : vector<1x128xi32>
    %35 = vector.broadcast %33 : i32 to vector<1x128xi32>
    %36 = arith.addi %35, %34 : vector<1x128xi32>
    %c250_i32 = arith.constant 250 : i32
    %37 = vector.broadcast %c250_i32 : i32 to vector<1x128xi32>
    %38 = arith.cmpi slt, %36, %37 : vector<1x128xi32>
    %cst_10 = arith.constant 1.000000e+00 : f32
    %39 = vector.broadcast %cst_10 : f32 to vector<1x128xf32>
    %40 = arith.mulf %39, %18 : vector<1x128xf32>
    %cst_11 = arith.constant 1.000000e+00 : f32
    %41 = vector.broadcast %cst_11 : f32 to vector<1x128xf32>
    %42 = arith.mulf %41, %32 : vector<1x128xf32>
    %43 = arith.addf %40, %42 : vector<1x128xf32>
    %cst_12 = arith.constant 0.000000e+00 : f32
    %44 = vector.broadcast %cst_12 : f32 to vector<1x128xf32>
    %45 = arith.select %38, %43, %44 : vector<1x128xi1>, vector<1x128xf32>
    %46 = vector.shape_cast %45 : vector<1x128xf32> to vector<1x1x128xf32>
    %cst_13 = arith.constant dense<0.000000e+00> : vector<1xf32>
    %47 = vector.multi_reduction <add>, %46, %cst_13 [1, 2] : vector<1x1x128xf32> to vector<1xf32>
    %48 = vector.shape_cast %47 : vector<1xf32> to vector<1x1x1xf32>
    %49 = vector.extract %48[0, 0, 0] : f32 from vector<1x1x1xf32>
    %50 = vector.broadcast %49 : f32 to vector<1x8x128xf32>
    %c0_14 = arith.constant 0 : index
    %c0_15 = arith.constant 0 : index
    %c0_16 = arith.constant 0 : index
    %51 = vector.load %arg3[%c0_14, %c0_15, %c0_16] : memref<1x8x128xf32, #tpu.memory_space<vmem>>, vector<1x8x128xf32>
    tpu.vector_store %arg3[%c0_14, %c0_15, %c0_16], %50 {strides = array<i32>} : memref<1x8x128xf32, #tpu.memory_space<vmem>>, vector<1x8x128xf32>,
    return
  }
  func.func @transform_0(%arg0: i32) -> (i32, i32) {
    %c0_i32 = arith.constant 0 : i32
    %c0_i32_0 = arith.constant 0 : i32
    return %c0_i32, %arg0 : i32, i32
  }
  func.func @transform_1(%arg0: i32) -> (i32, i32) {
    %c0_i32 = arith.constant 0 : i32
    %c0_i32_0 = arith.constant 0 : i32
    return %c0_i32, %arg0 : i32, i32
  }
  func.func @transform_2(%arg0: i32) -> (i32, i32, i32) {
    %c0_i32 = arith.constant 0 : i32
    %c0_i32_0 = arith.constant 0 : i32
    %c0_i32_1 = arith.constant 0 : i32
    return %arg0, %c0_i32, %c0_i32_0 : i32, i32, i32
  }
}

</mosaic_0001>

<llo_original>
// kernel: tpu_custom_call.1
$region0: #{tpu_custom_call.1}
  #allocation0 [shape = 'u32[]', space=smem, size = 0x4, offset = 0x4, fixed_abs, tag = 'smem constant byte address 0x4 - core index']
  #allocation1 [shape = 'u32[72,128]{1,0:T(1,128)}', space=vmem, size = 0x9000, scoped, tag = 'internal scratch']
  %s0 = inlined_call_operand.hbm [shape: f32[10,250], index: 0, kind: input, shape index: {}]
  %s1 = inlined_call_operand.hbm [shape: s32[1,250], index: 1, kind: input, shape index: {}]
  %s2 = inlined_call_operand.hbm [shape: f32[2,8,128], index: 2, kind: output, shape index: {}]
  %s3 = sld [smem:[#allocation0]]
  $region49: #{tpu_custom_call.1} parent=0
    _
  %s5 = ssub.s32 1, %s3
  %s6 = scalar_select 0, %s5, %s3
  $region1: #{tpu_custom_call.1} parent=0
    #allocation2 [shape = 'u8[16384]{0}', space=vmem, size = 0x4000, scoped, tag = 'input window, operand 0']
    #allocation3 [shape = 's32[2]{0}', space=sflag, size = 0x8, scoped, tag = 'scoped memory for tpu_custom_call.1']
    #allocation4 [shape = 's32[2]{0}', space=sflag, size = 0x8, scoped, tag = 'scoped memory for tpu_custom_call.1']
    #allocation5 [shape = 'u8[1024]{0}', space=vmem, size = 0x400, scoped, tag = 'input window, operand 1']
    #allocation6 [shape = 's32[2]{0}', space=sflag, size = 0x8, scoped, tag = 'scoped memory for tpu_custom_call.1']
    #allocation7 [shape = 'u8[8192]{0}', space=vmem, size = 0x2000, scoped, tag = 'output window, operand 0']
    %7 = vsyncpa [#allocation3], 0
    %s8 = scalar_lea.sflag [#allocation3], 1
    %9 = vsyncpa %s8, 0
    %10 = vsyncpa [#allocation6], 0
    %s11 = scalar_lea.sflag [#allocation6], 1
    %12 = vsyncpa %s11, 0
    %13 = vsyncpa [#allocation4], 0
    %s14 = scalar_lea.sflag [#allocation4], 1
    %15 = vsyncpa %s14, 0
    loop: start=0, step=1, limit=4
    $region2: #{tpu_custom_call.1} parent=1 // loop_pre_header
      _
    $region3: #{tpu_custom_call.1} parent=1 // loop_header
      %s17 = sphi 0, %s21
      %p18 = scmp.ge.s32.totalorder %s17, 4
      %s27 = sphi 0, %s29
      %s30 = sphi 0, %s27
      %s31 = sphi 0, %s30
      %s47 = sphi 0, %s31
      %s53 = sphi 0, %s55
      %s56 = sphi 0, %s53
      %s57 = sphi 0, %s56
      %s73 = sphi 0, %s57
      %s79 = sphi 0, %s81
      %s82 = sphi 0, %s79
      %s83 = sphi 0, %s82
      %s99 = sphi 0, %s83
    $region4: #{tpu_custom_call.1} parent=1 // loop_header_branch
      %20 = sbr.rel (%p18) target = $region8
    $region5: #{tpu_custom_call.1} parent=1 // loop_body
      %s22 = ssub.s32 %s17, 1
      %s23 = ssub.s32 %s17, 2
      %s24 = sadd.s32 %s17, 1
      %s25 = ssub.s32 %s17, %s24
      %p26 = scmp.eq.s32.totalorder %s25, 0
      %s28 = sadd.s32 %s27, 1
      %s29 = scalar_select %p26, %s27, %s28
      %p32 = pneg %p26
      %p33 = scmp.eq.s32.totalorder %s17, 1
      %p34 = por %p32, %p33
      %p35 = scmp.ne.s32.totalorder %s27, %s30
      %p36 = scmp.eq.s32.totalorder %s17, 0
      %p37 = por %p35, %p36
      %p38 = scmp.ne.s32.totalorder %s27, %s30
      %p39 = scmp.eq.s32.totalorder %s22, 1
      %p40 = por %p38, %p39
      %p41 = scmp.ne.s32.totalorder %s30, %s31
      %p42 = scmp.eq.s32.totalorder %s22, 0
      %p43 = por %p41, %p42
      %p44 = scmp.ne.s32.totalorder %s30, %s31
      %p45 = scmp.eq.s32.totalorder %s23, 1
      %p46 = por %p44, %p45
      %p48 = scmp.ne.s32.totalorder %s31, %s47
      %p49 = scmp.eq.s32.totalorder %s23, 0
      %p50 = por %p48, %p49
      %s51 = ssub.s32 %s17, %s24
      %p52 = scmp.eq.s32.totalorder %s51, 0
      %s54 = sadd.s32 %s53, 1
      %s55 = scalar_select %p52, %s53, %s54
      %p58 = pneg %p52
      %p59 = scmp.eq.s32.totalorder %s17, 1
      %p60 = por %p58, %p59
      %p61 = scmp.ne.s32.totalorder %s53, %s56
      %p62 = scmp.eq.s32.totalorder %s17, 0
      %p63 = por %p61, %p62
      %p64 = scmp.ne.s32.totalorder %s53, %s56
      %p65 = scmp.eq.s32.totalorder %s22, 1
      %p66 = por %p64, %p65
      %p67 = scmp.ne.s32.totalorder %s56, %s57
      %p68 = scmp.eq.s32.totalorder %s22, 0
      %p69 = por %p67, %p68
      %p70 = scmp.ne.s32.totalorder %s56, %s57
      %p71 = scmp.eq.s32.totalorder %s23, 1
      %p72 = por %p70, %p71
      %p74 = scmp.ne.s32.totalorder %s57, %s73
      %p75 = scmp.eq.s32.totalorder %s23, 0
      %p76 = por %p74, %p75
      %s77 = ssub.s32 %s17, %s24
      %p78 = scmp.eq.s32.totalorder %s77, 0
      %s80 = sadd.s32 %s79, 1
      %s81 = scalar_select %p78, %s79, %s80
      %p84 = pneg %p78
      %p85 = scmp.eq.s32.totalorder %s17, 1
      %p86 = por %p84, %p85
      %p87 = scmp.ne.s32.totalorder %s79, %s82
      %p88 = scmp.eq.s32.totalorder %s17, 0
      %p89 = por %p87, %p88
      %p90 = scmp.ne.s32.totalorder %s79, %s82
      %p91 = scmp.eq.s32.totalorder %s22, 1
      %p92 = por %p90, %p91
      %p93 = scmp.ne.s32.totalorder %s82, %s83
      %p94 = scmp.eq.s32.totalorder %s22, 0
      %p95 = por %p93, %p94
      %p96 = scmp.ne.s32.totalorder %s82, %s83
      %p97 = scmp.eq.s32.totalorder %s23, 1
      %p98 = por %p96, %p97
      %p100 = scmp.ne.s32.totalorder %s83, %s99
      %p101 = scmp.eq.s32.totalorder %s23, 0
      %p102 = por %p100, %p101
      %p103 = scmp.le.s32.totalorder 1, %s17
      %p104 = scmp.lt.s32.totalorder %s17, 3
      %p105 = pnand %p103, %p104
      %p106 = pneg %p105
      // Predicated region
      $region9: #{tpu_custom_call.1} parent=5 // pred_check
        _
      $region10: #{tpu_custom_call.1} parent=5 // pred_check_branch
        %108 = sbr.rel (%p105) target = $region12
      $region11: #{tpu_custom_call.1} parent=5 // pred_region
        %s109 = ssub.s32 %s17, 1
      $region12: #{tpu_custom_call.1} parent=5 // pred_fallthru
        _
      %p110 = scmp.lt.s32.totalorder %s17, 2
      // Predicated region
      $region13: #{tpu_custom_call.1} parent=5 // pred_check
        %p111 = pneg %p110
      $region14: #{tpu_custom_call.1} parent=5 // pred_check_branch
        %113 = sbr.rel (%p111) target = $region16
      $region15: #{tpu_custom_call.1} parent=5 // pred_region
        // Predicated region
        $region17: #{tpu_custom_call.1} parent=15 // pred_check
          %p114 = pneg %p37
        $region18: #{tpu_custom_call.1} parent=15 // pred_check_branch
          %116 = sbr.rel (%p114) target = $region20
        $region19: #{tpu_custom_call.1} parent=15 // pred_region
          %s117 = sand.u32 %s27, 1
          %s118 = scalar_lea.sflag [#allocation3], %s117
          %s119 = sand.u32 %s27, 1
          %s120 = smul.addr %s119, 16
          %s121 = scalar_lea.vmem [#allocation2], %s120
          %123 = vsyncadd %s118, 0
          %s124 = smul.addr %s17, 8
          %s125 = scalar_lea.hbm %s0, %s124
          %s126 = sshll.u32 %s125, 4
          %s127 = int_to_ptr.hbm [resolvable:$true] %s126
          %s128 = sshll.u32 %s121, 4
          %s129 = int_to_ptr.vmem [resolvable:$true] %s128
          %134 = dma.hbm_to_vmem [thread:$0]  %s127, 256, %s129, %s118, 256, 128, 8
        $region20: #{tpu_custom_call.1} parent=15 // pred_fallthru
          _
        // Predicated region
        $region21: #{tpu_custom_call.1} parent=15 // pred_check
          %p135 = pneg %p63
        $region22: #{tpu_custom_call.1} parent=15 // pred_check_branch
          %137 = sbr.rel (%p135) target = $region24
        $region23: #{tpu_custom_call.1} parent=15 // pred_region
          %s138 = sand.u32 %s53, 1
          %s139 = scalar_lea.sflag [#allocation6], %s138
          %s140 = sand.u32 %s53, 1
          %s141 = scalar_lea.vmem [#allocation5], %s140
          %143 = vsyncadd %s139, 0
          %s144 = scalar_lea.hbm %s1, %s17
          %s146 = sshll.u32 %s144, 4
          %s147 = int_to_ptr.hbm [resolvable:$true] %s146
          %s148 = sshll.u32 %s141, 4
          %s149 = int_to_ptr.vmem [resolvable:$true] %s148
          %151 = dma.hbm_to_vmem [thread:$0]  %s147, 16, %s149, %s139
        $region24: #{tpu_custom_call.1} parent=15 // pred_fallthru
          _
      $region16: #{tpu_custom_call.1} parent=5 // pred_fallthru
        _
      %p152 = scmp.le.s32.totalorder 1, %s17
      %p153 = scmp.lt.s32.totalorder %s17, 3
      %p154 = pnand %p152, %p153
      %p155 = pneg %p154
      // Predicated region
      $region25: #{tpu_custom_call.1} parent=5 // pred_check
        _
      $region26: #{tpu_custom_call.1} parent=5 // pred_check_branch
        %157 = sbr.rel (%p154) target = $region28
      $region27: #{tpu_custom_call.1} parent=5 // pred_region
        %s158 = ssub.s32 %s17, 1
        %s159 = sand.u32 %s30, 1
        %s160 = scalar_lea.sflag [#allocation3], %s159
        %s161 = sand.u32 %s30, 1
        %s162 = smul.addr %s161, 16
        %s163 = scalar_lea.vmem [#allocation2], %s162
        // Predicated region
        $region29: #{tpu_custom_call.1} parent=27 // pred_check
          %p164 = pneg %p43
        $region30: #{tpu_custom_call.1} parent=27 // pred_check_branch
          %166 = sbr.rel (%p164) target = $region32
        $region31: #{tpu_custom_call.1} parent=27 // pred_region
          %168 = dma.done %s160, 256
        $region32: #{tpu_custom_call.1} parent=27 // pred_fallthru
          _
        %s169 = sand.u32 %s56, 1
        %s170 = scalar_lea.sflag [#allocation6], %s169
        %s171 = sand.u32 %s56, 1
        %s172 = scalar_lea.vmem [#allocation5], %s171
        // Predicated region
        $region33: #{tpu_custom_call.1} parent=27 // pred_check
          %p173 = pneg %p69
        $region34: #{tpu_custom_call.1} parent=27 // pred_check_branch
          %175 = sbr.rel (%p173) target = $region36
        $region35: #{tpu_custom_call.1} parent=27 // pred_region
          %177 = dma.done %s170, 16
        $region36: #{tpu_custom_call.1} parent=27 // pred_fallthru
          _
        %s178 = sand.u32 %s30, 1
        %s179 = scalar_lea.sflag [#allocation3], %s178
        %s180 = sand.u32 %s30, 1
        %s181 = smul.addr %s180, 16
        %s182 = scalar_lea.vmem [#allocation2], %s181
        %p183 = pneg %p43
        %p184 = pneg %p40
        %s185 = sand.u32 %s56, 1
        %s186 = scalar_lea.sflag [#allocation6], %s185
        %s187 = sand.u32 %s56, 1
        %s188 = scalar_lea.vmem [#allocation5], %s187
        %p189 = pneg %p69
        %p190 = pneg %p66
        %p191 = pneg %p95
        %p192 = pneg %p92
        %s193 = sand.u32 %s82, 1
        %s194 = scalar_lea.sflag [#allocation4], %s193
        %s195 = sand.u32 %s82, 1
        %s196 = smul.addr %s195, 8
        %s197 = scalar_lea.vmem [#allocation7], %s196
        %v198 = vld [vmem:[%s163] sm:$0xff]
        %v199 = vld [vmem:[%s163 + $0x8] sm:$0x3]
        %v200 = vld [vmem:[%s172] sm:$0x1]
        %vm201 = vcmask 1041408
        %v202 = vsel %vm201, %v199, -inf
        %v203 = vmax.f32 %v198, %v202
        %v204 = vrot.slane %v203, 4
        %v205 = vmax.f32 %v203, %v204
        %v206 = vrot.slane %v205, 2
        %v207 = vmax.f32 %v205, %v206
        %v208 = vrot.slane %v207, 1
        %v209 = vmax.f32 %v207, %v208
        %v210 = vsub.f32 %v198, %v209
        %v211 = vsub.f32 %v199, %v209
        %v212 = vmul.f32 %v210, 1.442695
        %v213 = vpow.pop %v212
        %v214 = vmul.f32 %v211, 1.442695
        %v215 = vpow.pop %v214
        %v216 = vsel %vm201, %v215, 0.0
        %v217 = vadd.f32 %v213, %v216
        %v218 = vrot.slane %v217, 4
        %v219 = vadd.f32 %v217, %v218
        %v220 = vrot.slane %v219, 2
        %v221 = vadd.f32 %v219, %v220
        %v222 = vrot.slane %v221, 1
        %v223 = vadd.f32 %v221, %v222
        %v224 = vlog2.pop %v223
        %v225 = vmul.f32 %v224, 0.6931472
        %v226 = vlaneseq
        %v227 = vshrl.u32 %v226, 7
        %v228 = vadd.s32 %v227, 8
        %v229 = vperm.slane %v200, 0
        %vm230 = vcmp.eq.s32.totalorder %v227, %v229
        %vm231 = vcmp.eq.s32.totalorder %v228, %v229
        %v232 = vsel %vm230, 1, 0
        %v233 = vsel %vm231, 1, 0
        %v234 = vcvt.s32.f32 %v232
        %v235 = vcvt.s32.f32 %v233
        %v236 = vmul.f32 %v234, %v210
        %v237 = vmul.f32 %v235, %v211
        %v238 = vsel %vm201, %v237, 0.0
        %v239 = vadd.f32 %v236, %v238
        %v240 = vrot.slane %v239, 4
        %v241 = vadd.f32 %v239, %v240
        %v242 = vrot.slane %v241, 2
        %v243 = vadd.f32 %v241, %v242
        %v244 = vrot.slane %v243, 1
        %v245 = vadd.f32 %v243, %v244
        %v246 = vsub.f32 %v225, %v245
        %v247 = vrcp.pop %v223
        %v248 = vmul.f32 %v223, %v247
        %v249 = vsub.f32 1.0, %v248
        %v250 = vmul.f32 %v247, %v249
        %v251 = vadd.f32 %v247, %v250
        %vm252 = vweird.f32 %v223
        %vm253 = vweird.f32 %v247
        %vm254 = vmor %vm252, %vm253
        %v255 = vsel %vm254, %v247, %v251
        %v256 = vand.u32 2147483647, %v223
        %vm257 = vcmp.eq.f32.partialorder %v256, 8.507059e+37
        %v258 = vand.u32 %v223, 2147483648
        %v259 = vor.u32 1.1754944e-38, %v258
        %v260 = vsel %vm257, %v259, %v255
        %v261 = vmul.f32 1.0, %v260
        %v262 = vmul.f32 %v213, %v261
        %v263 = vmul.f32 %v215, %v261
        %v264 = vmax.f32 %v262, 1e-07
        %v265 = vmax.f32 %v263, 1e-07
        %v266 = vsel %vm201, %v265, 0.0
        %v267 = vadd.f32 %v264, %v266
        %v268 = vrot.slane %v267, 4
        %v269 = vadd.f32 %v267, %v268
        %v270 = vrot.slane %v269, 2
        %v271 = vadd.f32 %v269, %v270
        %v272 = vrot.slane %v271, 1
        %v273 = vadd.f32 %v271, %v272
        %v274 = vmul.f32 %v234, %v264
        %v275 = vmul.f32 %v235, %v265
        %v276 = vsel %vm201, %v275, 0.0
        %v277 = vadd.f32 %v274, %v276
        %v278 = vrot.slane %v277, 4
        %v279 = vadd.f32 %v277, %v278
        %v280 = vrot.slane %v279, 2
        %v281 = vadd.f32 %v279, %v280
        %v282 = vrot.slane %v281, 1
        %v283 = vadd.f32 %v281, %v282
        %v284 = vsub.f32 %v273, %v283
        %v285 = vmul.f32 %v284, 9.2103405
        %s286 = smul.u32 %s22, 128
        %v287 = vlaneseq
        %v288 = vand.u32 %v287, 127
        %v289 = vstv %s286
        %v290 = vadd.s32 %v289, %v288
        %vm291 = vcmp.lt.s32.totalorder %v290, 250
        %v292 = vadd.f32 %v246, %v285
        %v293 = vsel %vm291, %v292, 0.0
        %vm294 = vcmask 1040384
        %v295 = vsel %vm294, %v293, 0.0
        %296 = vadd.xlane.f32.xlu0 %v295
        %v297 = vpop.xlane.xlu0 %296
        %v298 = vrot.slane %v297, 4
        %v299 = vadd.f32 %v297, %v298
        %v300 = vrot.slane %v299, 2
        %v301 = vadd.f32 %v299, %v300
        %v302 = vrot.slane %v301, 1
        %v303 = vadd.f32 %v301, %v302
        %s304 = vtos %v303
        %v305 = vstv %s304
        %306 = vst [vmem:[%s197] sm:$0xff] %v305
        %s307 = sand.u32 %s82, 1
        %s308 = scalar_lea.sflag [#allocation4], %s307
        %s309 = sand.u32 %s82, 1
        %s310 = smul.addr %s309, 8
        %s311 = scalar_lea.vmem [#allocation7], %s310
        // Predicated region
        $region37: #{tpu_custom_call.1} parent=27 // pred_check
          %p312 = pneg %p92
        $region38: #{tpu_custom_call.1} parent=27 // pred_check_branch
          %314 = sbr.rel (%p312) target = $region40
        $region39: #{tpu_custom_call.1} parent=27 // pred_region
          %316 = vsyncadd %s308, 0
          %s317 = smul.addr %s22, 8
          %s318 = scalar_lea.hbm %s2, %s317
          %s320 = sshll.u32 %s311, 4
          %s321 = int_to_ptr.vmem [resolvable:$true] %s320
          %s322 = sshll.u32 %s318, 4
          %s323 = int_to_ptr.hbm [resolvable:$true] %s322
          %325 = dma.vmem_to_hbm [thread:$0]  %s321, 128, %s323, %s308
        $region40: #{tpu_custom_call.1} parent=27 // pred_fallthru
          _
      $region28: #{tpu_custom_call.1} parent=5 // pred_fallthru
        _
      %p326 = scmp.le.s32.totalorder 2, %s17
      // Predicated region
      $region41: #{tpu_custom_call.1} parent=5 // pred_check
        %p327 = pneg %p326
      $region42: #{tpu_custom_call.1} parent=5 // pred_check_branch
        %329 = sbr.rel (%p327) target = $region44
      $region43: #{tpu_custom_call.1} parent=5 // pred_region
        %s330 = ssub.s32 %s17, 2
        // Predicated region
        $region45: #{tpu_custom_call.1} parent=43 // pred_check
          %p331 = pneg %p98
        $region46: #{tpu_custom_call.1} parent=43 // pred_check_branch
          %333 = sbr.rel (%p331) target = $region48
        $region47: #{tpu_custom_call.1} parent=43 // pred_region
          %s334 = sand.u32 %s83, 1
          %s335 = scalar_lea.sflag [#allocation4], %s334
          %s336 = sand.u32 %s83, 1
          %s337 = smul.addr %s336, 8
          %s338 = scalar_lea.vmem [#allocation7], %s337
          %340 = dma.done %s335, 128
        $region48: #{tpu_custom_call.1} parent=43 // pred_fallthru
          _
      $region44: #{tpu_custom_call.1} parent=5 // pred_fallthru
        _
    $region6: #{tpu_custom_call.1} parent=1 // loop_footer
      %s21 = sadd.s32 1, %s17
    $region7: #{tpu_custom_call.1} parent=1 // loop_footer_branch
      %16 = sbr.rel target = $region3
    $region8: #{tpu_custom_call.1} parent=1 // loop_exit
      _
    %341 = vsyncpa [#allocation3], 1
    %s342 = scalar_lea.sflag [#allocation3], 1
    %343 = vsyncpa %s342, 1
    %344 = vsyncpa [#allocation6], 1
    %s345 = scalar_lea.sflag [#allocation6], 1
    %346 = vsyncpa %s345, 1
    %347 = vsyncpa [#allocation4], 1
    %s348 = scalar_lea.sflag [#allocation4], 1
    %349 = vsyncpa %s348, 1

</llo_original>
